<compile_context>
chip_gen: v6e
topology: v6e:2x2x1
jax: 0.10.0
libtpu: 0.0.40
codegen_flags: <defaults>
</compile_context>

<pallas_src>
import math

import jax
import jax.numpy as jnp
from jax import lax
from jax.experimental import pallas as pl
from jax.experimental.pallas import tpu as pltpu


def downsample_gemm_kernel(x_ref, w_ref, b_ref, o_ref):
    """One M-tile of the im2col GEMM: (tm, 9C)bf16 @ (9C, C)bf16 -> f32 + bias."""
    o_ref[...] = (
        jnp.dot(x_ref[...], w_ref[...], preferred_element_type=jnp.float32)
        + b_ref[...]
    )


def _pick_m_tile(m_total, k_dim, c_out):
    """Rows per grid step: multiple of 8, >=4 grid steps when possible, VMEM-aware."""
    row_bytes = k_dim * 2 + c_out * 4                 # bf16 input row + f32 output row
    vmem_cap = 6 << 20                                 # per-stream budget (x2 double-buffered)
    tm_cap = max(8, min(256, (vmem_cap // (2 * row_bytes)) // 8 * 8))
    tm = (pl.cdiv(m_total, 4) // 8) * 8                # aim for >= 4 grid steps
    return max(8, min(tm_cap, tm if tm > 0 else 8))


def downsample_forward(x_nchw, temb, w_oihw, bias):
    """DownSample.forward: Conv2d(C, C, 3, stride=2, padding=1)(x). temb is unused."""
    del temb  # DownSample ignores the timestep embedding.
    B, C, H, W = x_nchw.shape
    Ho, Wo = (H + 1) // 2, (W + 1) // 2
    Hp, Wp = 2 * Ho + 1, 2 * Wo + 1                    # padded extents actually read

    # ---- wrapper-side staging (layout plumbing, bf16) ----
    # TODO(synk): for full DDPM resolutions keep activations NHWC end-to-end and/or
    # gather the 9 taps with strided DMAs in-kernel (memory_space=pl.ANY) instead of
    # materializing the im2col slab in HBM; unnecessary at these sizes.
    x = jnp.transpose(x_nchw, (0, 2, 3, 1)).astype(jnp.bfloat16)        # NHWC bf16
    xp = jnp.pad(x, ((0, 0), (1, Hp - H - 1), (1, Wp - W - 1), (0, 0)))
    taps = [
        xp[:, ky:ky + 2 * Ho - 1:2, kx:kx + 2 * Wo - 1:2, :]            # (B, Ho, Wo, C)
        for ky in range(3) for kx in range(3)
    ]
    K = 9 * C
    cols = jnp.stack(taps, axis=3).reshape(B * Ho * Wo, K)              # tap-major im2col

    # OIHW -> (ky, kx, Cin, Cout) -> (9C, C), bf16 for the MXU.
    w_mat = jnp.transpose(w_oihw, (2, 3, 1, 0)).reshape(K, C).astype(jnp.bfloat16)
    b2d = bias.reshape(1, C).astype(jnp.float32)

    # ---- tiling over GEMM rows ----
    M = B * Ho * Wo
    tm = _pick_m_tile(M, K, C)
    M_pad = pl.cdiv(M, tm) * tm
    if M_pad != M:
        cols = jnp.pad(cols, ((0, M_pad - M), (0, 0)))                  # zero rows, sliced off below
    grid = (M_pad // tm,)

    in_block = tm * K * 2
    out_block = tm * C * 4
    w_bytes = K * C * 2
    vmem_limit = int(min(48 << 20,
                         max(16 << 20, 2 * (in_block + out_block) + w_bytes + (4 << 20))))

    out_flat = pl.pallas_call(
        downsample_gemm_kernel,
        out_shape=jax.ShapeDtypeStruct((M_pad, C), jnp.float32),
        grid_spec=pltpu.PrefetchScalarGridSpec(
            num_scalar_prefetch=0,
            grid=grid,
            in_specs=[
                pl.BlockSpec((tm, K), lambda i: (i, 0)),
                pl.BlockSpec((K, C), lambda i: (0, 0)),
                pl.BlockSpec((1, C), lambda i: (0, 0)),
            ],
            out_specs=pl.BlockSpec((tm, C), lambda i: (i, 0)),
        ),
        compiler_params=pltpu.CompilerParams(
            dimension_semantics=("parallel",),        # M tiles across both TCs on v7x
            vmem_limit_bytes=vmem_limit,
        ),
        cost_estimate=pl.CostEstimate(
            flops=2 * M_pad * K * C,
            transcendentals=0,
            bytes_accessed=M_pad * K * 2 + w_bytes + M_pad * C * 4,
        ),
    )(cols, w_mat, b2d)

    out_nhwc = out_flat[:M].reshape(B, Ho, Wo, C)
    return jnp.transpose(out_nhwc, (0, 3, 1, 2))


# ------------------------- parameter construction -------------------------

def init_params(key, in_ch):
    fan = in_ch * 9
    a = math.sqrt(6.0 / (fan + fan))                  # xavier_uniform_ on (C, C, 3, 3)
    w = jax.random.uniform(key, (in_ch, in_ch, 3, 3), jnp.float32, minval=-a, maxval=a)
    b = jnp.zeros((in_ch,), jnp.float32)
    return w, b


# ------------------------- pure-JAX reference -------------------------

def downsample_ref(x, w, b):
    y = lax.conv_general_dilated(x, w, (2, 2), ((1, 1), (1, 1)),
                                 dimension_numbers=("NCHW", "OIHW", "NCHW"))
    return y + b.reshape(1, -1, 1, 1)


if __name__ == "__main__":
    B, C, H, W, tdim = 2, 128, 16, 16, 32
    key = jax.random.PRNGKey(0)
    k_x, k_t, k_w = jax.random.split(key, 3)
    x = jax.random.normal(k_x, (B, C, H, W), jnp.float32)
    temb = jax.random.normal(k_t, (B, tdim), jnp.float32)   # unused by DownSample
    w, b = init_params(k_w, C)

    out = jax.block_until_ready(downsample_forward(x, temb, w, b))
    ref = downsample_ref(x, w, b)

    assert out.shape == (B, C, H // 2, W // 2), out.shape
    max_err = float(jnp.max(jnp.abs(out - ref)))
    assert jnp.allclose(out, ref, atol=5e-2, rtol=5e-2), f"max abs err = {max_err}"
    print("KERNEL_OK")
</pallas_src>

<mosaic_0001>
module attributes {stable_mosaic.version = 11 : i64} {
  func.func @downsample_gemm_kernel(%arg0: i32, %arg1: memref<32x1152xbf16, #tpu.memory_space<vmem>>, %arg2: memref<1152x128xbf16, #tpu.memory_space<vmem>>, %arg3: memref<1x128xf32, #tpu.memory_space<vmem>>, %arg4: memref<32x128xf32, #tpu.memory_space<vmem>>) attributes {dimension_semantics = [#tpu.dimension_semantics<parallel>], iteration_bounds = array<i64: 4>, scalar_prefetch = 0 : i64, scratch_operands = 0 : i64, tpu.core_type = #tpu.core_type<tc>, window_params = [{transform_indices = @transform_0, window_bounds = array<i64: 32, 1152>}, {pipeline_mode = #tpu.pipeline_mode<synchronous>, transform_indices = @transform_1, window_bounds = array<i64: 1152, 128>}, {pipeline_mode = #tpu.pipeline_mode<synchronous>, transform_indices = @transform_2, window_bounds = array<i64: 1, 128>}, {transform_indices = @transform_3, window_bounds = array<i64: 32, 128>}]} {
    %c0 = arith.constant 0 : index
    %c0_0 = arith.constant 0 : index
    %0 = vector.load %arg1[%c0, %c0_0] : memref<32x1152xbf16, #tpu.memory_space<vmem>>, vector<32x1152xbf16>
    %c0_1 = arith.constant 0 : index
    %c0_2 = arith.constant 0 : index
    %1 = vector.load %arg2[%c0_1, %c0_2] : memref<1152x128xbf16, #tpu.memory_space<vmem>>, vector<1152x128xbf16>
    %cst = arith.constant dense<0.000000e+00> : vector<32x128xf32>
    %2 = tpu.matmul %0, %1, %cst {dimension_numbers = #tpu.dot_dimension_numbers<[1], [0], [0], [1], [0, 0, 1, 1], [], []>} : vector<32x1152xbf16>, vector<1152x128xbf16>, vector<32x128xf32> -> vector<32x128xf32>
    %c0_3 = arith.constant 0 : index
    %c0_4 = arith.constant 0 : index
    %3 = vector.load %arg3[%c0_3, %c0_4] : memref<1x128xf32, #tpu.memory_space<vmem>>, vector<1x128xf32>
    %4 = vector.broadcast %3 : vector<1x128xf32> to vector<32x128xf32>
    %5 = arith.addf %2, %4 : vector<32x128xf32>
    %c0_5 = arith.constant 0 : index
    %c0_6 = arith.constant 0 : index
    %6 = vector.load %arg4[%c0_5, %c0_6] : memref<32x128xf32, #tpu.memory_space<vmem>>, vector<32x128xf32>
    tpu.vector_store %arg4[%c0_5, %c0_6], %5 {strides = array<i32>} : memref<32x128xf32, #tpu.memory_space<vmem>>, vector<32x128xf32>,
    return
  }
  func.func @transform_0(%arg0: i32) -> (i32, i32) {
    %c0_i32 = arith.constant 0 : i32
    %c0_i32_0 = arith.constant 0 : i32
    return %arg0, %c0_i32 : i32, i32
  }
  func.func @transform_1(%arg0: i32) -> (i32, i32) {
    %c0_i32 = arith.constant 0 : i32
    %c0_i32_0 = arith.constant 0 : i32
    %c0_i32_1 = arith.constant 0 : i32
    return %c0_i32, %c0_i32_0 : i32, i32
  }
  func.func @transform_2(%arg0: i32) -> (i32, i32) {
    %c0_i32 = arith.constant 0 : i32
    %c0_i32_0 = arith.constant 0 : i32
    %c0_i32_1 = arith.constant 0 : i32
    return %c0_i32, %c0_i32_0 : i32, i32
  }
  func.func @transform_3(%arg0: i32) -> (i32, i32) {
    %c0_i32 = arith.constant 0 : i32
    %c0_i32_0 = arith.constant 0 : i32
    return %arg0, %c0_i32 : i32, i32
  }
}

</mosaic_0001>

<llo_original>
// kernel: tpu_custom_call.1
$region0: #{tpu_custom_call.1}
  #allocation0 [shape = 'u32[]', space=smem, size = 0x4, offset = 0x4, fixed_abs, tag = 'smem constant byte address 0x4 - core index']
  #allocation1 [shape = 'u32[144,128]{1,0:T(1,128)}', space=vmem, size = 0x12000, scoped, tag = 'internal scratch']
  %s0 = inlined_call_operand.hbm [shape: bf16[128,1152], index: 0, kind: input, shape index: {}]
  %s1 = inlined_call_operand.hbm [shape: bf16[1152,128], index: 1, kind: input, shape index: {}]
  %s2 = inlined_call_operand.vmem [shape: f32[1,128], index: 2, kind: input, shape index: {}]
  %s3 = inlined_call_operand.hbm [shape: f32[128,128], index: 3, kind: output, shape index: {}]
  %s4 = sld [smem:[#allocation0]]
  $region53: #{tpu_custom_call.1} parent=0
    _
  %s6 = ssub.s32 1, %s4
  %s7 = scalar_select 0, %s6, %s4
  $region1: #{tpu_custom_call.1} parent=0
    #allocation2 [shape = 'u8[147456]{0}', space=vmem, size = 0x24000, scoped, tag = 'input window, operand 0']
    #allocation3 [shape = 's32[2]{0}', space=sflag, size = 0x8, scoped, tag = 'scoped memory for tpu_custom_call.1']
    #allocation4 [shape = 's32[2]{0}', space=sflag, size = 0x8, scoped, tag = 'scoped memory for tpu_custom_call.1']
    #allocation5 [shape = 'u8[294912]{0}', space=vmem, size = 0x48000, scoped, tag = 'input window, operand 1, single buffered']
    #allocation6 [shape = 's32[1]{0}', space=sflag, size = 0x4, scoped, tag = 'scoped memory for tpu_custom_call.1']
    #allocation7 [shape = 'u8[32768]{0}', space=vmem, size = 0x8000, scoped, tag = 'output window, operand 0']
    %8 = vsyncpa [#allocation3], 0
    %s9 = scalar_lea.sflag [#allocation3], 1
    %10 = vsyncpa %s9, 0
    %11 = vsyncpa [#allocation6], 0
    %12 = vsyncpa [#allocation4], 0
    %s13 = scalar_lea.sflag [#allocation4], 1
    %14 = vsyncpa %s13, 0
    loop: start=0, step=1, limit=6
    $region2: #{tpu_custom_call.1} parent=1 // loop_pre_header
      _
    $region3: #{tpu_custom_call.1} parent=1 // loop_header
      %s16 = sphi 0, %s20
      %p17 = scmp.ge.s32.totalorder %s16, 6
      %s26 = sphi 0, %s28
      %s29 = sphi 0, %s26
      %s30 = sphi 0, %s29
      %s46 = sphi 0, %s30
      %s50 = sphi 0, %s50
      %s52 = sphi 0, %s50
      %s53 = sphi 0, %s52
      %s67 = sphi 0, %s53
      %s71 = sphi 0, %s71
      %s73 = sphi 0, %s71
      %s74 = sphi 0, %s73
      %s88 = sphi 0, %s74
      %s94 = sphi 0, %s96
      %s97 = sphi 0, %s94
      %s98 = sphi 0, %s97
      %s114 = sphi 0, %s98
    $region4: #{tpu_custom_call.1} parent=1 // loop_header_branch
      %19 = sbr.rel (%p17) target = $region8
    $region5: #{tpu_custom_call.1} parent=1 // loop_body
      %s21 = ssub.s32 %s16, 1
      %s22 = ssub.s32 %s16, 2
      %s23 = sadd.s32 %s16, 1
      %s24 = ssub.s32 %s16, %s23
      %p25 = scmp.eq.s32.totalorder %s24, 0
      %s27 = sadd.s32 %s26, 1
      %s28 = scalar_select %p25, %s26, %s27
      %p31 = pneg %p25
      %p32 = scmp.eq.s32.totalorder %s16, 3
      %p33 = por %p31, %p32
      %p34 = scmp.ne.s32.totalorder %s26, %s29
      %p35 = scmp.eq.s32.totalorder %s16, 0
      %p36 = por %p34, %p35
      %p37 = scmp.ne.s32.totalorder %s26, %s29
      %p38 = scmp.eq.s32.totalorder %s21, 3
      %p39 = por %p37, %p38
      %p40 = scmp.ne.s32.totalorder %s29, %s30
      %p41 = scmp.eq.s32.totalorder %s21, 0
      %p42 = por %p40, %p41
      %p43 = scmp.ne.s32.totalorder %s29, %s30
      %p44 = scmp.eq.s32.totalorder %s22, 3
      %p45 = por %p43, %p44
      %p47 = scmp.ne.s32.totalorder %s30, %s46
      %p48 = scmp.eq.s32.totalorder %s22, 0
      %p49 = por %p47, %p48
      %s51 = sadd.s32 %s50, 1
      %p54 = scmp.eq.s32.totalorder %s16, 3
      %p55 = scmp.ne.s32.totalorder %s50, %s52
      %p56 = scmp.eq.s32.totalorder %s16, 0
      %p57 = por %p55, %p56
      %p58 = scmp.ne.s32.totalorder %s50, %s52
      %p59 = scmp.eq.s32.totalorder %s21, 3
      %p60 = por %p58, %p59
      %p61 = scmp.ne.s32.totalorder %s52, %s53
      %p62 = scmp.eq.s32.totalorder %s21, 0
      %p63 = por %p61, %p62
      %p64 = scmp.ne.s32.totalorder %s52, %s53
      %p65 = scmp.eq.s32.totalorder %s22, 3
      %p66 = por %p64, %p65
      %p68 = scmp.ne.s32.totalorder %s53, %s67
      %p69 = scmp.eq.s32.totalorder %s22, 0
      %p70 = por %p68, %p69
      %s72 = sadd.s32 %s71, 1
      %p75 = scmp.eq.s32.totalorder %s16, 3
      %p76 = scmp.ne.s32.totalorder %s71, %s73
      %p77 = scmp.eq.s32.totalorder %s16, 0
      %p78 = por %p76, %p77
      %p79 = scmp.ne.s32.totalorder %s71, %s73
      %p80 = scmp.eq.s32.totalorder %s21, 3
      %p81 = por %p79, %p80
      %p82 = scmp.ne.s32.totalorder %s73, %s74
      %p83 = scmp.eq.s32.totalorder %s21, 0
      %p84 = por %p82, %p83
      %p85 = scmp.ne.s32.totalorder %s73, %s74
      %p86 = scmp.eq.s32.totalorder %s22, 3
      %p87 = por %p85, %p86
      %p89 = scmp.ne.s32.totalorder %s74, %s88
      %p90 = scmp.eq.s32.totalorder %s22, 0
      %p91 = por %p89, %p90
      %s92 = ssub.s32 %s16, %s23
      %p93 = scmp.eq.s32.totalorder %s92, 0
      %s95 = sadd.s32 %s94, 1
      %s96 = scalar_select %p93, %s94, %s95
      %p99 = pneg %p93
      %p100 = scmp.eq.s32.totalorder %s16, 3
      %p101 = por %p99, %p100
      %p102 = scmp.ne.s32.totalorder %s94, %s97
      %p103 = scmp.eq.s32.totalorder %s16, 0
      %p104 = por %p102, %p103
      %p105 = scmp.ne.s32.totalorder %s94, %s97
      %p106 = scmp.eq.s32.totalorder %s21, 3
      %p107 = por %p105, %p106
      %p108 = scmp.ne.s32.totalorder %s97, %s98
      %p109 = scmp.eq.s32.totalorder %s21, 0
      %p110 = por %p108, %p109
      %p111 = scmp.ne.s32.totalorder %s97, %s98
      %p112 = scmp.eq.s32.totalorder %s22, 3
      %p113 = por %p111, %p112
      %p115 = scmp.ne.s32.totalorder %s98, %s114
      %p116 = scmp.eq.s32.totalorder %s22, 0
      %p117 = por %p115, %p116
      %p118 = scmp.le.s32.totalorder 1, %s16
      %p119 = scmp.lt.s32.totalorder %s16, 5
      %p120 = pnand %p118, %p119
      %p121 = pneg %p120
      // Predicated region
      $region9: #{tpu_custom_call.1} parent=5 // pred_check
        _
      $region10: #{tpu_custom_call.1} parent=5 // pred_check_branch
        %123 = sbr.rel (%p120) target = $region12
      $region11: #{tpu_custom_call.1} parent=5 // pred_region
        %s124 = ssub.s32 %s16, 1
        // Predicated region
        $region13: #{tpu_custom_call.1} parent=11 // pred_check
          %p125 = pneg %p63
        $region14: #{tpu_custom_call.1} parent=11 // pred_check_branch
          %127 = sbr.rel (%p125) target = $region16
        $region15: #{tpu_custom_call.1} parent=11 // pred_region
          %s129 = ssub.s32 9216, 9216
          %130 = vsyncadd [#allocation6], %s129
          %s131 = sshll.u32 [#allocation5], 4
          %s132 = int_to_ptr.vmem [resolvable:$true] %s131
          %137 = dma.hbm_to_vmem [thread:$0]  %s1, 9216, %s132, [#allocation6], 64, 64, 4
        $region16: #{tpu_custom_call.1} parent=11 // pred_fallthru
          _
        // Predicated region
        $region17: #{tpu_custom_call.1} parent=11 // pred_check
          %p138 = pneg %p84
        $region18: #{tpu_custom_call.1} parent=11 // pred_check_branch
          %140 = sbr.rel (%p138) target = $region20
        $region19: #{tpu_custom_call.1} parent=11 // pred_region
          _
        $region20: #{tpu_custom_call.1} parent=11 // pred_fallthru
          _
      $region12: #{tpu_custom_call.1} parent=5 // pred_fallthru
        _
      %p141 = scmp.lt.s32.totalorder %s16, 4
      // Predicated region
      $region21: #{tpu_custom_call.1} parent=5 // pred_check
        %p142 = pneg %p141
      $region22: #{tpu_custom_call.1} parent=5 // pred_check_branch
        %144 = sbr.rel (%p142) target = $region24
      $region23: #{tpu_custom_call.1} parent=5 // pred_region
        // Predicated region
        $region25: #{tpu_custom_call.1} parent=23 // pred_check
          %p145 = pneg %p36
        $region26: #{tpu_custom_call.1} parent=23 // pred_check_branch
          %147 = sbr.rel (%p145) target = $region28
        $region27: #{tpu_custom_call.1} parent=23 // pred_region
          %s148 = sand.u32 %s26, 1
          %s149 = scalar_lea.sflag [#allocation3], %s148
          %s150 = sand.u32 %s26, 1
          %s151 = smul.addr %s150, 144
          %s152 = scalar_lea.vmem [#allocation2], %s151
          %s153 = smul.u32 4, %s16
          %s155 = ssub.s32 2304, 2304
          %156 = vsyncadd %s149, %s155
          %s157 = smul.addr %s153, 9
          %s158 = smul.addr %s157, 64
          %s159 = scalar_lea.hbm %s0, %s158
          %s160 = sshll.u32 %s152, 4
          %s161 = int_to_ptr.vmem [resolvable:$true] %s160
          %166 = dma.hbm_to_vmem [thread:$0]  %s159, 2304, %s161, %s149, 576, 576, 36
        $region28: #{tpu_custom_call.1} parent=23 // pred_fallthru
          _
      $region24: #{tpu_custom_call.1} parent=5 // pred_fallthru
        _
      %p167 = scmp.le.s32.totalorder 1, %s16
      %p168 = scmp.lt.s32.totalorder %s16, 5
      %p169 = pnand %p167, %p168
      %p170 = pneg %p169
      // Predicated region
      $region29: #{tpu_custom_call.1} parent=5 // pred_check
        _
      $region30: #{tpu_custom_call.1} parent=5 // pred_check_branch
        %172 = sbr.rel (%p169) target = $region32
      $region31: #{tpu_custom_call.1} parent=5 // pred_region
        %s173 = ssub.s32 %s16, 1
        %s174 = sand.u32 %s29, 1
        %s175 = scalar_lea.sflag [#allocation3], %s174
        %s176 = sand.u32 %s29, 1
        %s177 = smul.addr %s176, 144
        %s178 = scalar_lea.vmem [#allocation2], %s177
        // Predicated region
        $region33: #{tpu_custom_call.1} parent=31 // pred_check
          %p179 = pneg %p42
        $region34: #{tpu_custom_call.1} parent=31 // pred_check_branch
          %181 = sbr.rel (%p179) target = $region36
        $region35: #{tpu_custom_call.1} parent=31 // pred_region
          %182 = dma.done %s175, 2304
        $region36: #{tpu_custom_call.1} parent=31 // pred_fallthru
          _
        // Predicated region
        $region37: #{tpu_custom_call.1} parent=31 // pred_check
          %p183 = pneg %p63
        $region38: #{tpu_custom_call.1} parent=31 // pred_check_branch
          %185 = sbr.rel (%p183) target = $region40
        $region39: #{tpu_custom_call.1} parent=31 // pred_region
          %186 = dma.done [#allocation6], 9216
        $region40: #{tpu_custom_call.1} parent=31 // pred_fallthru
          _
        %s187 = sand.u32 %s29, 1
        %s188 = scalar_lea.sflag [#allocation3], %s187
        %s189 = sand.u32 %s29, 1
        %s190 = smul.addr %s189, 144
        %s191 = scalar_lea.vmem [#allocation2], %s190
        %p192 = pneg %p42
        %p193 = pneg %p39
        %p194 = pneg %p63
        %p195 = pneg %p60
        %p196 = pneg %p84
        %p197 = pneg %p81
        %p198 = pneg %p110
        %p199 = pneg %p107
        %s200 = sand.u32 %s97, 1
        %s201 = scalar_lea.sflag [#allocation4], %s200
        %s202 = sand.u32 %s97, 1
        %s203 = smul.addr %s202, 32
        %s204 = scalar_lea.vmem [#allocation7], %s203
        %s205 = smul.u32 4, %s21
        %s206 = smul.u32 4, %s21
        %v208 = vld [vmem:[%s178] sm:$0xff]
        %v209 = vld [vmem:[%s178 + $0x8] sm:$0xff]
        %v210 = vld [vmem:[%s178 + $0x10] sm:$0xff]
        %v211 = vld [vmem:[%s178 + $0x18] sm:$0xff]
        %v212 = vld [vmem:[%s178 + $0x20] sm:$0xf]
        %v213 = vld [vmem:[%s178 + $0x24] sm:$0xff]
        %v214 = vld [vmem:[%s178 + $0x2c] sm:$0xff]
        %v215 = vld [vmem:[%s178 + $0x34] sm:$0xff]
        %v216 = vld [vmem:[%s178 + $0x3c] sm:$0xff]
        %v217 = vld [vmem:[%s178 + $0x44] sm:$0xf]
        %v218 = vld [vmem:[%s178 + $0x48] sm:$0xff]
        %v219 = vld [vmem:[%s178 + $0x50] sm:$0xff]
        %v220 = vld [vmem:[%s178 + $0x58] sm:$0xff]
        %v221 = vld [vmem:[%s178 + $0x60] sm:$0xff]
        %v222 = vld [vmem:[%s178 + $0x68] sm:$0xf]
        %v223 = vld [vmem:[%s178 + $0x6c] sm:$0xff]
        %v224 = vld [vmem:[%s178 + $0x74] sm:$0xff]
        %v225 = vld [vmem:[%s178 + $0x7c] sm:$0xff]
        %v226 = vld [vmem:[%s178 + $0x84] sm:$0xff]
        %v227 = vld [vmem:[%s178 + $0x8c] sm:$0xf]
        %v228 = vld [vmem:[#allocation5] sm:$0xf]
        %v229 = vld [vmem:[#allocation5 + $0x4] sm:$0xf]
        %v230 = vld [vmem:[#allocation5 + $0x8] sm:$0xf]
        %v231 = vld [vmem:[#allocation5 + $0xc] sm:$0xf]
        %v232 = vld [vmem:[#allocation5 + $0x10] sm:$0xf]
        %v233 = vld [vmem:[#allocation5 + $0x14] sm:$0xf]
        %v234 = vld [vmem:[#allocation5 + $0x18] sm:$0xf]
        %v235 = vld [vmem:[#allocation5 + $0x1c] sm:$0xf]
        %v236 = vld [vmem:[#allocation5 + $0x20] sm:$0xf]
        %v237 = vld [vmem:[#allocation5 + $0x24] sm:$0xf]
        %v238 = vld [vmem:[#allocation5 + $0x28] sm:$0xf]
        %v239 = vld [vmem:[#allocation5 + $0x2c] sm:$0xf]
        %v240 = vld [vmem:[#allocation5 + $0x30] sm:$0xf]
        %v241 = vld [vmem:[#allocation5 + $0x34] sm:$0xf]
        %v242 = vld [vmem:[#allocation5 + $0x38] sm:$0xf]
        %v243 = vld [vmem:[#allocation5 + $0x3c] sm:$0xf]
        %v244 = vld [vmem:[#allocation5 + $0x40] sm:$0xf]
        %v245 = vld [vmem:[#allocation5 + $0x44] sm:$0xf]
        %v246 = vld [vmem:[#allocation5 + $0x48] sm:$0xf]
        %v247 = vld [vmem:[#allocation5 + $0x4c] sm:$0xf]
        %v248 = vld [vmem:[#allocation5 + $0x50] sm:$0xf]
        %v249 = vld [vmem:[#allocation5 + $0x54] sm:$0xf]
        %v250 = vld [vmem:[#allocation5 + $0x58] sm:$0xf]
        %v251 = vld [vmem:[#allocation5 + $0x5c] sm:$0xf]
        %v252 = vld [vmem:[#allocation5 + $0x60] sm:$0xf]
        %v253 = vld [vmem:[#allocation5 + $0x64] sm:$0xf]
        %v254 = vld [vmem:[#allocation5 + $0x68] sm:$0xf]
        %v255 = vld [vmem:[#allocation5 + $0x6c] sm:$0xf]
        %v256 = vld [vmem:[#allocation5 + $0x70] sm:$0xf]
        %v257 = vld [vmem:[#allocation5 + $0x74] sm:$0xf]
        %v258 = vld [vmem:[#allocation5 + $0x78] sm:$0xf]
        %v259 = vld [vmem:[#allocation5 + $0x7c] sm:$0xf]
        %v260 = vld [vmem:[#allocation5 + $0x80] sm:$0xf]
        %v261 = vld [vmem:[#allocation5 + $0x84] sm:$0xf]
        %v262 = vld [vmem:[#allocation5 + $0x88] sm:$0xf]
        %v263 = vld [vmem:[#allocation5 + $0x8c] sm:$0xf]
        %v264 = vld [vmem:[#allocation5 + $0x90] sm:$0xf]
        %v265 = vld [vmem:[#allocation5 + $0x94] sm:$0xf]
        %v266 = vld [vmem:[#allocation5 + $0x98] sm:$0xf]
        %v267 = vld [vmem:[#allocation5 + $0x9c] sm:$0xf]
        %v268 = vld [vmem:[#allocation5 + $0xa0] sm:$0xf]
        %v269 = vld [vmem:[#allocation5 + $0xa4] sm:$0xf]
        %v270 = vld [vmem:[#allocation5 + $0xa8] sm:$0xf]
        %v271 = vld [vmem:[#allocation5 + $0xac] sm:$0xf]
        %v272 = vld [vmem:[#allocation5 + $0xb0] sm:$0xf]
        %v273 = vld [vmem:[#allocation5 + $0xb4] sm:$0xf]
        %v274 = vld [vmem:[#allocation5 + $0xb8] sm:$0xf]
        %v275 = vld [vmem:[#allocation5 + $0xbc] sm:$0xf]
        %v276 = vld [vmem:[#allocation5 + $0xc0] sm:$0xf]
        %v277 = vld [vmem:[#allocation5 + $0xc4] sm:$0xf]
        %v278 = vld [vmem:[#allocation5 + $0xc8] sm:$0xf]
        %v279 = vld [vmem:[#allocation5 + $0xcc] sm:$0xf]
        %v280 = vld [vmem:[#allocation5 + $0xd0] sm:$0xf]
        %v281 = vld [vmem:[#allocation5 + $0xd4] sm:$0xf]
        %v282 = vld [vmem:[#allocation5 + $0xd8] sm:$0xf]
        %v283 = vld [vmem:[#allocation5 + $0xdc] sm:$0xf]
        %v284 = vld [vmem:[#allocation5 + $0xe0] sm:$0xf]
        %v285 = vld [vmem:[#allocation5 + $0xe4] sm:$0xf]
        %v286 = vld [vmem:[#allocation5 + $0xe8] sm:$0xf]
        %v287 = vld [vmem:[#allocation5 + $0xec] sm:$0xf]
        %v288 = vld [vmem:[#allocation5 + $0xf0] sm:$0xf]
        %v289 = vld [vmem:[#allocation5 + $0xf4] sm:$0xf]
        %v290 = vld [vmem:[#allocation5 + $0xf8] sm:$0xf]
        %v291 = vld [vmem:[#allocation5 + $0xfc] sm:$0xf]
        %v292 = vld [vmem:[#allocation5 + $0x100] sm:$0xf]
        %v293 = vld [vmem:[#allocation5 + $0x104] sm:$0xf]
        %v294 = vld [vmem:[#allocation5 + $0x108] sm:$0xf]
        %v295 = vld [vmem:[#allocation5 + $0x10c] sm:$0xf]
        %v296 = vld [vmem:[#allocation5 + $0x110] sm:$0xf]
        %v297 = vld [vmem:[#allocation5 + $0x114] sm:$0xf]
        %v298 = vld [vmem:[#allocation5 + $0x118] sm:$0xf]
        %v299 = vld [vmem:[#allocation5 + $0x11c] sm:$0xf]
        %v300 = vld [vmem:[#allocation5 + $0x120] sm:$0xf]
        %v301 = vld [vmem:[#allocation5 + $0x124] sm:$0xf]
        %v302 = vld [vmem:[#allocation5 + $0x128] sm:$0xf]
        %v303 = vld [vmem:[#allocation5 + $0x12c] sm:$0xf]
        %v304 = vld [vmem:[#allocation5 + $0x130] sm:$0xf]
        %v305 = vld [vmem:[#allocation5 + $0x134] sm:$0xf]
        %v306 = vld [vmem:[#allocation5 + $0x138] sm:$0xf]
        %v307 = vld [vmem:[#allocation5 + $0x13c] sm:$0xf]
        %v308 = vld [vmem:[#allocation5 + $0x140] sm:$0xf]
        %v309 = vld [vmem:[#allocation5 + $0x144] sm:$0xf]
        %v310 = vld [vmem:[#allocation5 + $0x148] sm:$0xf]
        %v311 = vld [vmem:[#allocation5 + $0x14c] sm:$0xf]
        %v312 = vld [vmem:[#allocation5 + $0x150] sm:$0xf]
        %v313 = vld [vmem:[#allocation5 + $0x154] sm:$0xf]
        %v314 = vld [vmem:[#allocation5 + $0x158] sm:$0xf]
        %v315 = vld [vmem:[#allocation5 + $0x15c] sm:$0xf]
        %v316 = vld [vmem:[#allocation5 + $0x160] sm:$0xf]
        %v317 = vld [vmem:[#allocation5 + $0x164] sm:$0xf]
        %v318 = vld [vmem:[#allocation5 + $0x168] sm:$0xf]
        %v319 = vld [vmem:[#allocation5 + $0x16c] sm:$0xf]
        %v320 = vld [vmem:[#allocation5 + $0x170] sm:$0xf]
        %v321 = vld [vmem:[#allocation5 + $0x174] sm:$0xf]
        %v322 = vld [vmem:[#allocation5 + $0x178] sm:$0xf]
        %v323 = vld [vmem:[#allocation5 + $0x17c] sm:$0xf]
        %v324 = vld [vmem:[#allocation5 + $0x180] sm:$0xf]
        %v325 = vld [vmem:[#allocation5 + $0x184] sm:$0xf]
        %v326 = vld [vmem:[#allocation5 + $0x188] sm:$0xf]
        %v327 = vld [vmem:[#allocation5 + $0x18c] sm:$0xf]
        %v328 = vld [vmem:[#allocation5 + $0x190] sm:$0xf]
        %v329 = vld [vmem:[#allocation5 + $0x194] sm:$0xf]
        %v330 = vld [vmem:[#allocation5 + $0x198] sm:$0xf]
        %v331 = vld [vmem:[#allocation5 + $0x19c] sm:$0xf]
        %v332 = vld [vmem:[#allocation5 + $0x1a0] sm:$0xf]
        %v333 = vld [vmem:[#allocation5 + $0x1a4] sm:$0xf]
        %v334 = vld [vmem:[#allocation5 + $0x1a8] sm:$0xf]
        %v335 = vld [vmem:[#allocation5 + $0x1ac] sm:$0xf]
        %v336 = vld [vmem:[#allocation5 + $0x1b0] sm:$0xf]
        %v337 = vld [vmem:[#allocation5 + $0x1b4] sm:$0xf]
        %v338 = vld [vmem:[#allocation5 + $0x1b8] sm:$0xf]
        %v339 = vld [vmem:[#allocation5 + $0x1bc] sm:$0xf]
        %v340 = vld [vmem:[#allocation5 + $0x1c0] sm:$0xf]
        %v341 = vld [vmem:[#allocation5 + $0x1c4] sm:$0xf]
        %v342 = vld [vmem:[#allocation5 + $0x1c8] sm:$0xf]
        %v343 = vld [vmem:[#allocation5 + $0x1cc] sm:$0xf]
        %v344 = vld [vmem:[#allocation5 + $0x1d0] sm:$0xf]
        %v345 = vld [vmem:[#allocation5 + $0x1d4] sm:$0xf]
        %v346 = vld [vmem:[#allocation5 + $0x1d8] sm:$0xf]
        %v347 = vld [vmem:[#allocation5 + $0x1dc] sm:$0xf]
        %v348 = vld [vmem:[#allocation5 + $0x1e0] sm:$0xf]
        %v349 = vld [vmem:[#allocation5 + $0x1e4] sm:$0xf]
        %v350 = vld [vmem:[#allocation5 + $0x1e8] sm:$0xf]
        %v351 = vld [vmem:[#allocation5 + $0x1ec] sm:$0xf]
        %v352 = vld [vmem:[#allocation5 + $0x1f0] sm:$0xf]
        %v353 = vld [vmem:[#allocation5 + $0x1f4] sm:$0xf]
        %v354 = vld [vmem:[#allocation5 + $0x1f8] sm:$0xf]
        %v355 = vld [vmem:[#allocation5 + $0x1fc] sm:$0xf]
        %v356 = vld [vmem:[#allocation5 + $0x200] sm:$0xf]
        %v357 = vld [vmem:[#allocation5 + $0x204] sm:$0xf]
        %v358 = vld [vmem:[#allocation5 + $0x208] sm:$0xf]
        %v359 = vld [vmem:[#allocation5 + $0x20c] sm:$0xf]
        %v360 = vld [vmem:[#allocation5 + $0x210] sm:$0xf]
        %v361 = vld [vmem:[#allocation5 + $0x214] sm:$0xf]
        %v362 = vld [vmem:[#allocation5 + $0x218] sm:$0xf]
        %v363 = vld [vmem:[#allocation5 + $0x21c] sm:$0xf]
        %v364 = vld [vmem:[#allocation5 + $0x220] sm:$0xf]
        %v365 = vld [vmem:[#allocation5 + $0x224] sm:$0xf]
        %v366 = vld [vmem:[#allocation5 + $0x228] sm:$0xf]
        %v367 = vld [vmem:[#allocation5 + $0x22c] sm:$0xf]
        %v368 = vld [vmem:[#allocation5 + $0x230] sm:$0xf]
        %v369 = vld [vmem:[#allocation5 + $0x234] sm:$0xf]
        %v370 = vld [vmem:[#allocation5 + $0x238] sm:$0xf]
        %v371 = vld [vmem:[#allocation5 + $0x23c] sm:$0xf]
        %v372 = vld [vmem:[%s2] sm:$0x1]
        %v374 = vlaneseq
        %v375 = vshrl.u32 %v374, 7
        %v376 = vsub.s32 0, %v375
        %v377 = vrot.slane %v372, %v376
        %v399 = vunpack.c.l.b16 %v208
        %v400 = vunpack.c.h.b16 %v208
        %v401 = vunpack.c.l.b16 %v209
        %v402 = vunpack.c.h.b16 %v209
        %v403 = vunpack.c.l.b16 %v210
        %v404 = vunpack.c.h.b16 %v210
        %v405 = vunpack.c.l.b16 %v211
        %v406 = vunpack.c.h.b16 %v211
        %v407 = vunpack.c.l.b16 %v212
        %v408 = vunpack.c.l.b16 %v213
        %v409 = vunpack.c.h.b16 %v213
        %v410 = vunpack.c.l.b16 %v214
        %v411 = vunpack.c.h.b16 %v214
        %v412 = vunpack.c.l.b16 %v215
        %v413 = vunpack.c.h.b16 %v215
        %v414 = vunpack.c.l.b16 %v216
        %v415 = vunpack.c.h.b16 %v216
        %v416 = vunpack.c.l.b16 %v217
        %v417 = vunpack.c.l.b16 %v218
        %v418 = vunpack.c.h.b16 %v218
        %v419 = vunpack.c.l.b16 %v219
        %v420 = vunpack.c.h.b16 %v219
        %v421 = vunpack.c.l.b16 %v220
        %v422 = vunpack.c.h.b16 %v220
        %v423 = vunpack.c.l.b16 %v221
        %v424 = vunpack.c.h.b16 %v221
        %v425 = vunpack.c.l.b16 %v222
        %v426 = vunpack.c.l.b16 %v223
        %v427 = vunpack.c.h.b16 %v223
        %v428 = vunpack.c.l.b16 %v224
        %v429 = vunpack.c.h.b16 %v224
        %v430 = vunpack.c.l.b16 %v225
        %v431 = vunpack.c.h.b16 %v225
        %v432 = vunpack.c.l.b16 %v226
        %v433 = vunpack.c.h.b16 %v226
        %v434 = vunpack.c.l.b16 %v227
        %v435 = vpack.c.b16 %v408, %v399
        %v436 = vpack.c.b16 %v409, %v400
        %v437 = vpack.c.b16 %v410, %v401
        %v438 = vpack.c.b16 %v411, %v402
        %v439 = vpack.c.b16 %v412, %v403
        %v440 = vpack.c.b16 %v413, %v404
        %v441 = vpack.c.b16 %v414, %v405
        %v442 = vpack.c.b16 %v415, %v406
        %v443 = vpack.c.b16 %v416, %v407
        %v444 = vpack.c.b16 %v426, %v417
        %v445 = vpack.c.b16 %v427, %v418
        %v446 = vpack.c.b16 %v428, %v419
        %v447 = vpack.c.b16 %v429, %v420
        %v448 = vpack.c.b16 %v430, %v421
        %v449 = vpack.c.b16 %v431, %v422
        %v450 = vpack.c.b16 %v432, %v423
        %v451 = vpack.c.b16 %v433, %v424
        %v452 = vpack.c.b16 %v434, %v425
        %v615 = vunpack.c.l.b16 %v228
        %v616 = vunpack.c.l.b16 %v229
        %v617 = vunpack.c.l.b16 %v230
        %v618 = vunpack.c.l.b16 %v231
        %v619 = vunpack.c.l.b16 %v232
        %v620 = vunpack.c.l.b16 %v233
        %v621 = vunpack.c.l.b16 %v234
        %v622 = vunpack.c.l.b16 %v235
        %v623 = vunpack.c.l.b16 %v236
        %v624 = vunpack.c.l.b16 %v237
        %v625 = vunpack.c.l.b16 %v238
        %v626 = vunpack.c.l.b16 %v239
        %v627 = vunpack.c.l.b16 %v240
        %v628 = vunpack.c.l.b16 %v241
        %v629 = vunpack.c.l.b16 %v242
        %v630 = vunpack.c.l.b16 %v243
        %v631 = vunpack.c.l.b16 %v244
        %v632 = vunpack.c.l.b16 %v245
        %v633 = vunpack.c.l.b16 %v246
        %v634 = vunpack.c.l.b16 %v247
        %v635 = vunpack.c.l.b16 %v248
        %v636 = vunpack.c.l.b16 %v249
        %v637 = vunpack.c.l.b16 %v250
        %v638 = vunpack.c.l.b16 %v251
        %v639 = vunpack.c.l.b16 %v252
        %v640 = vunpack.c.l.b16 %v253
        %v641 = vunpack.c.l.b16 %v254
        %v642 = vunpack.c.l.b16 %v255
        %v643 = vunpack.c.l.b16 %v256
        %v644 = vunpack.c.l.b16 %v257
        %v645 = vunpack.c.l.b16 %v258
        %v646 = vunpack.c.l.b16 %v259
        %v647 = vunpack.c.l.b16 %v260
        %v648 = vunpack.c.l.b16 %v261
        %v649 = vunpack.c.l.b16 %v262
        %v650 = vunpack.c.l.b16 %v263
        %v651 = vunpack.c.l.b16 %v264
        %v652 = vunpack.c.l.b16 %v265
        %v653 = vunpack.c.l.b16 %v266
        %v654 = vunpack.c.l.b16 %v267
        %v655 = vunpack.c.l.b16 %v268
        %v656 = vunpack.c.l.b16 %v269
        %v657 = vunpack.c.l.b16 %v270
        %v658 = vunpack.c.l.b16 %v271
        %v659 = vunpack.c.l.b16 %v272
        %v660 = vunpack.c.l.b16 %v273
        %v661 = vunpack.c.l.b16 %v274
        %v662 = vunpack.c.l.b16 %v275
        %v663 = vunpack.c.l.b16 %v276
        %v664 = vunpack.c.l.b16 %v277
        %v665 = vunpack.c.l.b16 %v278
        %v666 = vunpack.c.l.b16 %v279
        %v667 = vunpack.c.l.b16 %v280
        %v668 = vunpack.c.l.b16 %v281
        %v669 = vunpack.c.l.b16 %v282
        %v670 = vunpack.c.l.b16 %v283
        %v671 = vunpack.c.l.b16 %v284
        %v672 = vunpack.c.l.b16 %v285
        %v673 = vunpack.c.l.b16 %v286
        %v674 = vunpack.c.l.b16 %v287
        %v675 = vunpack.c.l.b16 %v288
        %v676 = vunpack.c.l.b16 %v289
        %v677 = vunpack.c.l.b16 %v290
        %v678 = vunpack.c.l.b16 %v291
        %v679 = vunpack.c.l.b16 %v292
        %v680 = vunpack.c.l.b16 %v293
        %v681 = vunpack.c.l.b16 %v294
        %v682 = vunpack.c.l.b16 %v295
        %v683 = vunpack.c.l.b16 %v296
        %v684 = vunpack.c.l.b16 %v297
        %v685 = vunpack.c.l.b16 %v298
        %v686 = vunpack.c.l.b16 %v299
        %v687 = vunpack.c.l.b16 %v300
        %v688 = vunpack.c.l.b16 %v301
        %v689 = vunpack.c.l.b16 %v302
        %v690 = vunpack.c.l.b16 %v303
        %v691 = vunpack.c.l.b16 %v304
        %v692 = vunpack.c.l.b16 %v305
        %v693 = vunpack.c.l.b16 %v306
        %v694 = vunpack.c.l.b16 %v307
        %v695 = vunpack.c.l.b16 %v308
        %v696 = vunpack.c.l.b16 %v309
        %v697 = vunpack.c.l.b16 %v310
        %v698 = vunpack.c.l.b16 %v311
        %v699 = vunpack.c.l.b16 %v312
        %v700 = vunpack.c.l.b16 %v313
        %v701 = vunpack.c.l.b16 %v314
        %v702 = vunpack.c.l.b16 %v315
        %v703 = vunpack.c.l.b16 %v316
        %v704 = vunpack.c.l.b16 %v317
        %v705 = vunpack.c.l.b16 %v318
        %v706 = vunpack.c.l.b16 %v319
        %v707 = vunpack.c.l.b16 %v320
        %v708 = vunpack.c.l.b16 %v321
        %v709 = vunpack.c.l.b16 %v322
        %v710 = vunpack.c.l.b16 %v323
        %v711 = vunpack.c.l.b16 %v324
        %v712 = vunpack.c.l.b16 %v325
        %v713 = vunpack.c.l.b16 %v326
        %v714 = vunpack.c.l.b16 %v327
        %v715 = vunpack.c.l.b16 %v328
        %v716 = vunpack.c.l.b16 %v329
        %v717 = vunpack.c.l.b16 %v330
        %v718 = vunpack.c.l.b16 %v331
        %v719 = vunpack.c.l.b16 %v332
        %v720 = vunpack.c.l.b16 %v333
        %v721 = vunpack.c.l.b16 %v334
        %v722 = vunpack.c.l.b16 %v335
        %v723 = vunpack.c.l.b16 %v336
        %v724 = vunpack.c.l.b16 %v337
        %v725 = vunpack.c.l.b16 %v338
        %v726 = vunpack.c.l.b16 %v339
        %v727 = vunpack.c.l.b16 %v340
        %v728 = vunpack.c.l.b16 %v341
        %v729 = vunpack.c.l.b16 %v342
        %v730 = vunpack.c.l.b16 %v343
        %v731 = vunpack.c.l.b16 %v344
        %v732 = vunpack.c.l.b16 %v345
        %v733 = vunpack.c.l.b16 %v346
        %v734 = vunpack.c.l.b16 %v347
        %v735 = vunpack.c.l.b16 %v348
        %v736 = vunpack.c.l.b16 %v349
        %v737 = vunpack.c.l.b16 %v350
        %v738 = vunpack.c.l.b16 %v351
        %v739 = vunpack.c.l.b16 %v352
        %v740 = vunpack.c.l.b16 %v353
        %v741 = vunpack.c.l.b16 %v354
        %v742 = vunpack.c.l.b16 %v355
        %v743 = vunpack.c.l.b16 %v356
        %v744 = vunpack.c.l.b16 %v357
        %v745 = vunpack.c.l.b16 %v358
        %v746 = vunpack.c.l.b16 %v359
        %v747 = vunpack.c.l.b16 %v360
        %v748 = vunpack.c.l.b16 %v361
        %v749 = vunpack.c.l.b16 %v362
        %v750 = vunpack.c.l.b16 %v363
        %v751 = vunpack.c.l.b16 %v364
        %v752 = vunpack.c.l.b16 %v365
        %v753 = vunpack.c.l.b16 %v366
        %v754 = vunpack.c.l.b16 %v367
        %v755 = vunpack.c.l.b16 %v368
        %v756 = vunpack.c.l.b16 %v369
        %v757 = vunpack.c.l.b16 %v370
        %v758 = vunpack.c.l.b16 %v371
        %v759 = vpack.c.b16 %v616, %v615
        %v760 = vpack.c.b16 %v618, %v617
        %v761 = vpack.c.b16 %v620, %v619
        %v762 = vpack.c.b16 %v622, %v621
        %v763 = vpack.c.b16 %v624, %v623
        %v764 = vpack.c.b16 %v626, %v625
        %v765 = vpack.c.b16 %v628, %v627
        %v766 = vpack.c.b16 %v630, %v629
        %v767 = vpack.c.b16 %v632, %v631
        %v768 = vpack.c.b16 %v634, %v633
        %v769 = vpack.c.b16 %v636, %v635
        %v770 = vpack.c.b16 %v638, %v637
        %v771 = vpack.c.b16 %v640, %v639
        %v772 = vpack.c.b16 %v642, %v641
        %v773 = vpack.c.b16 %v644, %v643
        %v774 = vpack.c.b16 %v646, %v645
        %v775 = vpack.c.b16 %v648, %v647
        %v776 = vpack.c.b16 %v650, %v649
        %v777 = vpack.c.b16 %v652, %v651
        %v778 = vpack.c.b16 %v654, %v653
        %v779 = vpack.c.b16 %v656, %v655
        %v780 = vpack.c.b16 %v658, %v657
        %v781 = vpack.c.b16 %v660, %v659
        %v782 = vpack.c.b16 %v662, %v661
        %v783 = vpack.c.b16 %v664, %v663
        %v784 = vpack.c.b16 %v666, %v665
        %v785 = vpack.c.b16 %v668, %v667
        %v786 = vpack.c.b16 %v670, %v669
        %v787 = vpack.c.b16 %v672, %v671
        %v788 = vpack.c.b16 %v674, %v673
        %v789 = vpack.c.b16 %v676, %v675
        %v790 = vpack.c.b16 %v678, %v677
        %v791 = vpack.c.b16 %v680, %v679
        %v792 = vpack.c.b16 %v682, %v681
        %v793 = vpack.c.b16 %v684, %v683
        %v794 = vpack.c.b16 %v686, %v685
        %v795 = vpack.c.b16 %v688, %v687
        %v796 = vpack.c.b16 %v690, %v689
        %v797 = vpack.c.b16 %v692, %v691
        %v798 = vpack.c.b16 %v694, %v693
        %v799 = vpack.c.b16 %v696, %v695
        %v800 = vpack.c.b16 %v698, %v697
        %v801 = vpack.c.b16 %v700, %v699
        %v802 = vpack.c.b16 %v702, %v701
        %v803 = vpack.c.b16 %v704, %v703
        %v804 = vpack.c.b16 %v706, %v705
        %v805 = vpack.c.b16 %v708, %v707
        %v806 = vpack.c.b16 %v710, %v709
        %v807 = vpack.c.b16 %v712, %v711
        %v808 = vpack.c.b16 %v714, %v713
        %v809 = vpack.c.b16 %v716, %v715
        %v810 = vpack.c.b16 %v718, %v717
        %v811 = vpack.c.b16 %v720, %v719
        %v812 = vpack.c.b16 %v722, %v721
        %v813 = vpack.c.b16 %v724, %v723
        %v814 = vpack.c.b16 %v726, %v725
        %v815 = vpack.c.b16 %v728, %v727
        %v816 = vpack.c.b16 %v730, %v729
        %v817 = vpack.c.b16 %v732, %v731
        %v818 = vpack.c.b16 %v734, %v733
        %v819 = vpack.c.b16 %v736, %v735
        %v820 = vpack.c.b16 %v738, %v737
        %v821 = vpack.c.b16 %v740, %v739
        %v822 = vpack.c.b16 %v742, %v741
        %v823 = vpack.c.b16 %v744, %v743
        %v824 = vpack.c.b16 %v746, %v745
        %v825 = vpack.c.b16 %v748, %v747
        %v826 = vpack.c.b16 %v750, %v749
        %v827 = vpack.c.b16 %v752, %v751
        %v828 = vpack.c.b16 %v754, %v753
        %v829 = vpack.c.b16 %v756, %v755
        %v830 = vpack.c.b16 %v758, %v757
        %903 = vmatprep.subr.bf16.mxu0 0
        %904 = vmatpush1.bf16.msra.mxu0 %v766
        %905 = vmatprep.subr.bf16.mxu0 0
        %906 = vmatpush1.bf16.msra.mxu0 %v765
        %907 = vmatprep.subr.bf16.mxu0 0
        %908 = vmatpush1.bf16.msra.mxu0 %v764
        %909 = vmatprep.subr.bf16.mxu0 0
        %910 = vmatpush1.bf16.msra.mxu0 %v763
        %911 = vmatprep.subr.bf16.mxu0 0
        %912 = vmatpush1.bf16.msra.mxu0 %v762
        %913 = vmatprep.subr.bf16.mxu0 0
        %914 = vmatpush1.bf16.msra.mxu0 %v761
        %915 = vmatprep.subr.bf16.mxu0 0
        %916 = vmatpush1.bf16.msra.mxu0 %v760
        %917 = vmatprep.subr.bf16.mxu0 0
        %918 = vmatpush1.bf16.msra.mxu0 %v759
        %919 = vmatprep.subr.bf16.mxu0 0
        %920 = vmatpush2.bf16.msra.mxu0 %v774
        %921 = vmatprep.subr.bf16.mxu0 0
        %922 = vmatpush2.bf16.msra.mxu0 %v773
        %923 = vmatprep.subr.bf16.mxu0 0
        %924 = vmatpush2.bf16.msra.mxu0 %v772
        %925 = vmatprep.subr.bf16.mxu0 0
        %926 = vmatpush2.bf16.msra.mxu0 %v771
        %927 = vmatprep.subr.bf16.mxu0 0
        %928 = vmatpush2.bf16.msra.mxu0 %v770
        %929 = vmatprep.subr.bf16.mxu0 0
        %930 = vmatpush2.bf16.msra.mxu0 %v769
        %931 = vmatprep.subr.bf16.mxu0 0
        %932 = vmatpush2.bf16.msra.mxu0 %v768
        %933 = vmatprep.subr.bf16.mxu0 0
        %934 = vmatpush2.bf16.msra.mxu0 %v767
        %935 = vmatprep.mubr.bf16.mxu0 %v436
        %936 = vmatmul.mubr.bf16.gmra.mxu0 %v435
        %v937 = vpop.f32.mrf.mxu0
        %v938 = vadd.f32 %v377, %v937
        %v939 = vpop.f32.mrf.mxu0
        %v940 = vpop.f32.mrf.mxu0
        %v941 = vadd.f32 %v377, %v940
        %v942 = vpop.f32.mrf.mxu0
        %943 = vmatprep.mubr.bf16.mxu0 %v445
        %944 = vmatmul.mubr.bf16.gmra.mxu0 %v444
        %v945 = vpop.f32.mrf.mxu0
        %v946 = vadd.f32 %v377, %v945
        %v947 = vpop.f32.mrf.mxu0
        %v948 = vpop.f32.mrf.mxu0
        %v949 = vadd.f32 %v377, %v948
        %v950 = vpop.f32.mrf.mxu0
        %951 = vdwg.mxu0
        %952 = vmatprep.subr.bf16.mxu0 0
        %953 = vmatpush1.bf16.msra.mxu0 %v782
        %954 = vmatprep.subr.bf16.mxu0 0
        %955 = vmatpush1.bf16.msra.mxu0 %v781
        %956 = vmatprep.subr.bf16.mxu0 0
        %957 = vmatpush1.bf16.msra.mxu0 %v780
        %958 = vmatprep.subr.bf16.mxu0 0
        %959 = vmatpush1.bf16.msra.mxu0 %v779
        %960 = vmatprep.subr.bf16.mxu0 0
        %961 = vmatpush1.bf16.msra.mxu0 %v778
        %962 = vmatprep.subr.bf16.mxu0 0
        %963 = vmatpush1.bf16.msra.mxu0 %v777
        %964 = vmatprep.subr.bf16.mxu0 0
        %965 = vmatpush1.bf16.msra.mxu0 %v776
        %966 = vmatprep.subr.bf16.mxu0 0
        %967 = vmatpush1.bf16.msra.mxu0 %v775
        %968 = vmatprep.subr.bf16.mxu0 0
        %969 = vmatpush2.bf16.msra.mxu0 %v790
        %970 = vmatprep.subr.bf16.mxu0 0
        %971 = vmatpush2.bf16.msra.mxu0 %v789
        %972 = vmatprep.subr.bf16.mxu0 0
        %973 = vmatpush2.bf16.msra.mxu0 %v788
        %974 = vmatprep.subr.bf16.mxu0 0
        %975 = vmatpush2.bf16.msra.mxu0 %v787
        %976 = vmatprep.subr.bf16.mxu0 0
        %977 = vmatpush2.bf16.msra.mxu0 %v786
        %978 = vmatprep.subr.bf16.mxu0 0
        %979 = vmatpush2.bf16.msra.mxu0 %v785
        %980 = vmatprep.subr.bf16.mxu0 0
        %981 = vmatpush2.bf16.msra.mxu0 %v784
        %982 = vmatprep.subr.bf16.mxu0 0
        %983 = vmatpush2.bf16.msra.mxu0 %v783
        %984 = vmatprep.mubr.bf16.mxu0 %v438
        %985 = vmatmul.mubr.bf16.gmra.mxu0 %v437
        %v986 = vpop.f32.mrf.mxu0
        %v987 = vadd.f32 %v938, %v986
        %v988 = vpop.f32.mrf.mxu0
        %v989 = vpop.f32.mrf.mxu0
        %v990 = vadd.f32 %v941, %v989
        %v991 = vpop.f32.mrf.mxu0
        %992 = vmatprep.mubr.bf16.mxu0 %v447
        %993 = vmatmul.mubr.bf16.gmra.mxu0 %v446
        %v994 = vpop.f32.mrf.mxu0
        %v995 = vadd.f32 %v946, %v994
        %v996 = vpop.f32.mrf.mxu0
        %v997 = vpop.f32.mrf.mxu0
        %v998 = vadd.f32 %v949, %v997
        %v999 = vpop.f32.mrf.mxu0
        %1000 = vdwg.mxu0
        %1001 = vmatprep.subr.bf16.mxu0 0
        %1002 = vmatpush1.bf16.msra.mxu0 %v798
        %1003 = vmatprep.subr.bf16.mxu0 0
        %1004 = vmatpush1.bf16.msra.mxu0 %v797
        %1005 = vmatprep.subr.bf16.mxu0 0
        %1006 = vmatpush1.bf16.msra.mxu0 %v796
        %1007 = vmatprep.subr.bf16.mxu0 0
        %1008 = vmatpush1.bf16.msra.mxu0 %v795
        %1009 = vmatprep.subr.bf16.mxu0 0
        %1010 = vmatpush1.bf16.msra.mxu0 %v794
        %1011 = vmatprep.subr.bf16.mxu0 0
        %1012 = vmatpush1.bf16.msra.mxu0 %v793
        %1013 = vmatprep.subr.bf16.mxu0 0
        %1014 = vmatpush1.bf16.msra.mxu0 %v792
        %1015 = vmatprep.subr.bf16.mxu0 0
        %1016 = vmatpush1.bf16.msra.mxu0 %v791
        %1017 = vmatprep.subr.bf16.mxu0 0
        %1018 = vmatpush2.bf16.msra.mxu0 %v806
        %1019 = vmatprep.subr.bf16.mxu0 0
        %1020 = vmatpush2.bf16.msra.mxu0 %v805
        %1021 = vmatprep.subr.bf16.mxu0 0
        %1022 = vmatpush2.bf16.msra.mxu0 %v804
        %1023 = vmatprep.subr.bf16.mxu0 0
        %1024 = vmatpush2.bf16.msra.mxu0 %v803
        %1025 = vmatprep.subr.bf16.mxu0 0
        %1026 = vmatpush2.bf16.msra.mxu0 %v802
        %1027 = vmatprep.subr.bf16.mxu0 0
        %1028 = vmatpush2.bf16.msra.mxu0 %v801
        %1029 = vmatprep.subr.bf16.mxu0 0
        %1030 = vmatpush2.bf16.msra.mxu0 %v800
        %1031 = vmatprep.subr.bf16.mxu0 0
        %1032 = vmatpush2.bf16.msra.mxu0 %v799
        %1033 = vmatprep.mubr.bf16.mxu0 %v440
        %1034 = vmatmul.mubr.bf16.gmra.mxu0 %v439
        %v1035 = vpop.f32.mrf.mxu0
        %v1036 = vadd.f32 %v987, %v1035
        %v1037 = vpop.f32.mrf.mxu0
        %v1038 = vpop.f32.mrf.mxu0
        %v1039 = vadd.f32 %v990, %v1038
        %v1040 = vpop.f32.mrf.mxu0
        %1041 = vmatprep.mubr.bf16.mxu0 %v449
        %1042 = vmatmul.mubr.bf16.gmra.mxu0 %v448
        %v1043 = vpop.f32.mrf.mxu0
        %v1044 = vadd.f32 %v995, %v1043
        %v1045 = vpop.f32.mrf.mxu0
        %v1046 = vpop.f32.mrf.mxu0
        %v1047 = vadd.f32 %v998, %v1046
        %v1048 = vpop.f32.mrf.mxu0
        %1049 = vdwg.mxu0
        %1050 = vmatprep.subr.bf16.mxu0 0
        %1051 = vmatpush1.bf16.msra.mxu0 %v814
        %1052 = vmatprep.subr.bf16.mxu0 0
        %1053 = vmatpush1.bf16.msra.mxu0 %v813
        %1054 = vmatprep.subr.bf16.mxu0 0
        %1055 = vmatpush1.bf16.msra.mxu0 %v812
        %1056 = vmatprep.subr.bf16.mxu0 0
        %1057 = vmatpush1.bf16.msra.mxu0 %v811
        %1058 = vmatprep.subr.bf16.mxu0 0
        %1059 = vmatpush1.bf16.msra.mxu0 %v810
        %1060 = vmatprep.subr.bf16.mxu0 0
        %1061 = vmatpush1.bf16.msra.mxu0 %v809
        %1062 = vmatprep.subr.bf16.mxu0 0
        %1063 = vmatpush1.bf16.msra.mxu0 %v808
        %1064 = vmatprep.subr.bf16.mxu0 0
        %1065 = vmatpush1.bf16.msra.mxu0 %v807
        %1066 = vmatprep.subr.bf16.mxu0 0
        %1067 = vmatpush2.bf16.msra.mxu0 %v822
        %1068 = vmatprep.subr.bf16.mxu0 0
        %1069 = vmatpush2.bf16.msra.mxu0 %v821
        %1070 = vmatprep.subr.bf16.mxu0 0
        %1071 = vmatpush2.bf16.msra.mxu0 %v820
        %1072 = vmatprep.subr.bf16.mxu0 0
        %1073 = vmatpush2.bf16.msra.mxu0 %v819
        %1074 = vmatprep.subr.bf16.mxu0 0
        %1075 = vmatpush2.bf16.msra.mxu0 %v818
        %1076 = vmatprep.subr.bf16.mxu0 0
        %1077 = vmatpush2.bf16.msra.mxu0 %v817
        %1078 = vmatprep.subr.bf16.mxu0 0
        %1079 = vmatpush2.bf16.msra.mxu0 %v816
        %1080 = vmatprep.subr.bf16.mxu0 0
        %1081 = vmatpush2.bf16.msra.mxu0 %v815
        %1082 = vmatprep.mubr.bf16.mxu0 %v442
        %1083 = vmatmul.mubr.bf16.gmra.mxu0 %v441
        %v1084 = vpop.f32.mrf.mxu0
        %v1085 = vadd.f32 %v1036, %v1084
        %v1086 = vpop.f32.mrf.mxu0
        %v1087 = vpop.f32.mrf.mxu0
        %v1088 = vadd.f32 %v1039, %v1087
        %v1089 = vpop.f32.mrf.mxu0
        %1090 = vmatprep.mubr.bf16.mxu0 %v451
        %1091 = vmatmul.mubr.bf16.gmra.mxu0 %v450
        %v1092 = vpop.f32.mrf.mxu0
        %v1093 = vadd.f32 %v1044, %v1092
        %v1094 = vpop.f32.mrf.mxu0
        %v1095 = vpop.f32.mrf.mxu0
        %v1096 = vadd.f32 %v1047, %v1095
        %v1097 = vpop.f32.mrf.mxu0
        %1098 = vdwg.mxu0
        %1099 = vmatprep.subr.bf16.mxu0 0
        %1100 = vmatpush1.bf16.msra.mxu0 %v830
        %1101 = vmatprep.subr.bf16.mxu0 0
        %1102 = vmatpush1.bf16.msra.mxu0 %v829
        %1103 = vmatprep.subr.bf16.mxu0 0
        %1104 = vmatpush1.bf16.msra.mxu0 %v828
        %1105 = vmatprep.subr.bf16.mxu0 0
        %1106 = vmatpush1.bf16.msra.mxu0 %v827
        %1107 = vmatprep.subr.bf16.mxu0 0
        %1108 = vmatpush1.bf16.msra.mxu0 %v826
        %1109 = vmatprep.subr.bf16.mxu0 0
        %1110 = vmatpush1.bf16.msra.mxu0 %v825
        %1111 = vmatprep.subr.bf16.mxu0 0
        %1112 = vmatpush1.bf16.msra.mxu0 %v824
        %1113 = vmatprep.subr.bf16.mxu0 0
        %1114 = vmatpush1.bf16.msra.mxu0 %v823
        %1115 = vmatprep.subr.bf16.mxu0 0
        %1116 = vmatpush2.bf16.msra.mxu0 0
        %1117 = vmatprep.subr.bf16.mxu0 0
        %1118 = vmatpush2.bf16.msra.mxu0 0
        %1119 = vmatprep.subr.bf16.mxu0 0
        %1120 = vmatpush2.bf16.msra.mxu0 0
        %1121 = vmatprep.subr.bf16.mxu0 0
        %1122 = vmatpush2.bf16.msra.mxu0 0
        %1123 = vmatprep.subr.bf16.mxu0 0
        %1124 = vmatpush2.bf16.msra.mxu0 0
        %1125 = vmatprep.subr.bf16.mxu0 0
        %1126 = vmatpush2.bf16.msra.mxu0 0
        %1127 = vmatprep.subr.bf16.mxu0 0
        %1128 = vmatpush2.bf16.msra.mxu0 0
        %1129 = vmatprep.subr.bf16.mxu0 0
        %1130 = vmatpush2.bf16.msra.mxu0 0
        %1131 = vmatprep.mubr.bf16.mxu0 0
        %1132 = vmatmul.mubr.bf16.gmra.mxu0 %v443
        %v1133 = vpop.f32.mrf.mxu0
        %v1134 = vadd.f32 %v1085, %v1133
        %v1135 = vpop.f32.mrf.mxu0
        %v1136 = vpop.f32.mrf.mxu0
        %v1137 = vadd.f32 %v1088, %v1136
        %v1138 = vpop.f32.mrf.mxu0
        %1139 = vmatprep.mubr.bf16.mxu0 0
        %1140 = vmatmul.mubr.bf16.gmra.mxu0 %v452
        %v1141 = vpop.f32.mrf.mxu0
        %v1142 = vadd.f32 %v1093, %v1141
        %v1143 = vpop.f32.mrf.mxu0
        %v1144 = vpop.f32.mrf.mxu0
        %v1145 = vadd.f32 %v1096, %v1144
        %v1146 = vpop.f32.mrf.mxu0
        %1147 = vdwg.mxu0
        %1148 = vst [vmem:[%s204] sm:$0xff] %v1134
        %1149 = vst [vmem:[%s204 + $0x8] sm:$0xff] %v1137
        %1150 = vst [vmem:[%s204 + $0x10] sm:$0xff] %v1142
        %1151 = vst [vmem:[%s204 + $0x18] sm:$0xff] %v1145
        %s1152 = sand.u32 %s97, 1
        %s1153 = scalar_lea.sflag [#allocation4], %s1152
        %s1154 = sand.u32 %s97, 1
        %s1155 = smul.addr %s1154, 32
        %s1156 = scalar_lea.vmem [#allocation7], %s1155
        // Predicated region
        $region41: #{tpu_custom_call.1} parent=31 // pred_check
          %p1157 = pneg %p107
        $region42: #{tpu_custom_call.1} parent=31 // pred_check_branch
          %1159 = sbr.rel (%p1157) target = $region44
        $region43: #{tpu_custom_call.1} parent=31 // pred_region
          %s1160 = smul.u32 4, %s21
          %s1162 = ssub.s32 512, 512
          %1163 = vsyncadd %s1153, %s1162
          %s1164 = smul.addr %s1160, 128
          %s1165 = scalar_lea.hbm %s3, %s1164
          %s1166 = sshll.u32 %s1156, 4
          %s1167 = int_to_ptr.vmem [resolvable:$true] %s1166
          %1172 = dma.vmem_to_hbm [thread:$0]  %s1167, 512, %s1165, %s1153, 128, 128, 8
        $region44: #{tpu_custom_call.1} parent=31 // pred_fallthru
          _
      $region32: #{tpu_custom_call.1} parent=5 // pred_fallthru
        _
      %p1173 = scmp.le.s32.totalorder 2, %s16
      // Predicated region
      $region45: #{tpu_custom_call.1} parent=5 // pred_check
        %p1174 = pneg %p1173
      $region46: #{tpu_custom_call.1} parent=5 // pred_check_branch
        %1176 = sbr.rel (%p1174) target = $region48
      $region47: #{tpu_custom_call.1} parent=5 // pred_region
        %s1177 = ssub.s32 %s16, 2
        // Predicated region
        $region49: #{tpu_custom_call.1} parent=47 // pred_check
          %p1178 = pneg %p113
        $region50: #{tpu_custom_call.1} parent=47 // pred_check_branch
          %1180 = sbr.rel (%p1178) target = $region52
        $region51: #{tpu_custom_call.1} parent=47 // pred_region
          %s1181 = sand.u32 %s98, 1
          %s1182 = scalar_lea.sflag [#allocation4], %s1181
          %s1183 = sand.u32 %s98, 1
          %s1184 = smul.addr %s1183, 32
          %s1185 = scalar_lea.vmem [#allocation7], %s1184
          %1186 = dma.done %s1182, 512
        $region52: #{tpu_custom_call.1} parent=47 // pred_fallthru
          _
      $region48: #{tpu_custom_call.1} parent=5 // pred_fallthru
        _
    $region6: #{tpu_custom_call.1} parent=1 // loop_footer
      %s20 = sadd.s32 1, %s16
    $region7: #{tpu_custom_call.1} parent=1 // loop_footer_branch
      %15 = sbr.rel target = $region3
    $region8: #{tpu_custom_call.1} parent=1 // loop_exit
      _
    %1187 = vsyncpa [#allocation3], 1
    %s1188 = scalar_lea.sflag [#allocation3], 1
    %1189 = vsyncpa %s1188, 1
    %1190 = vsyncpa [#allocation6], 1
    %1191 = vsyncpa [#allocation4], 1
    %s1192 = scalar_lea.sflag [#allocation4], 1
    %1193 = vsyncpa %s1192, 1

</llo_original>
